<compile_context>
chip_gen: v7x
topology: tpu7x:2x2x1
jax: 0.10.0
libtpu: 0.0.40
codegen_flags: <defaults>
</compile_context>

<pallas_src>
import functools

import jax
import jax.numpy as jnp
from jax.experimental import pallas as pl
from jax.experimental.pallas import tpu as pltpu


def _round_up(x: int, m: int) -> int:
    return (x + m - 1) // m * m


def _make_bert_mlp_kernel(use_softmax: bool):
    def kernel(x_ref, w1_ref, b1_ref, w2_ref, b2_ref, o_ref):
        # x_ref:  (bm, D)  bf16 input rows for this grid step (streamed)
        # w1_ref: (D, H)   bf16, resident in VMEM (constant index_map)
        # b1_ref: (1, H)   f32
        # w2_ref: (H, C)   bf16, resident
        # b2_ref: (1, C)   f32
        # o_ref:  (bm, C)  probabilities in the caller's dtype
        x = x_ref[...]

        # Linear 1: bf16 MXU matmul, f32 accumulate; bias + ReLU in f32.
        h = jnp.dot(x, w1_ref[...], preferred_element_type=jnp.float32)
        h = jnp.maximum(h + b1_ref[...], 0.0)

        # Linear 2 (fc): feed the MXU bf16 again, accumulate f32.
        logits = jnp.dot(h.astype(w2_ref.dtype), w2_ref[...],
                         preferred_element_type=jnp.float32)
        logits = logits + b2_ref[...]

        if use_softmax:
            m = jnp.max(logits, axis=-1, keepdims=True)
            e = jnp.exp(logits - m)
            denom = jnp.sum(e, axis=-1, keepdims=True)
            # approx reciprocal -> EUP slot; epilogue stays hidden under DMA/MXU.
            out = e * pl.reciprocal(denom, approx=True)
        else:
            out = jax.nn.sigmoid(logits)

        o_ref[...] = out.astype(o_ref.dtype)

    return kernel


def _pick_tiling(batch: int, max_block_m: int = 1024):
    """Pick (block_m, padded_batch, n_steps) for the batch dimension.

    - Small batches (<= 256 rows): one grid step; per-step overhead (~0.35us)
      dominates, so splitting only hurts.
    - Larger batches: tiles capped at 1024 rows (fits v5e's scoped VMEM with
      bf16 double-buffering) and always >= 2 grid steps so the 'parallel' axis
      can use both TensorCores on v7x.  Padding waste is <= 16 rows per step.
    """
    b16 = _round_up(batch, 16)          # 16-sublane alignment (bf16 packing)
    if b16 <= 256:
        return b16, b16, 1
    n_steps = max(2, pl.cdiv(b16, max_block_m))
    block_m = _round_up(pl.cdiv(b16, n_steps), 16)
    return block_m, block_m * n_steps, n_steps


@functools.partial(jax.jit,
                   static_argnames=("num_class", "block_m", "compute_dtype"))
def bert_mlp_forward(x, w1, b1, w2, b2, *, num_class, block_m=None,
                     compute_dtype=jnp.bfloat16):
    """Pallas equivalent of BertMLP.forward.

    Args:
      x:  (B, in_size) activations.
      w1: (in_size, 128) — torch weight (128, in_size) pre-transposed.
      b1: (128,)
      w2: (128, C) where C = num_class if num_class > 2 else 1 (pre-transposed).
      b2: (C,)
    Returns:
      (B, C) probabilities (softmax over classes, or sigmoid if binary),
      in x.dtype.
    """
    B, D = x.shape
    H = w1.shape[1]
    C = w2.shape[1]
    use_softmax = num_class > 2
    out_dtype = x.dtype

    if block_m is None:
        block_m, b_padded, n_steps = _pick_tiling(B)
    else:
        sub = 16 if jnp.dtype(compute_dtype).itemsize < 4 else 8
        assert block_m % sub == 0, (block_m, sub)
        b_padded = _round_up(B, block_m)
        n_steps = b_padded // block_m

    # bf16 MXU inputs: halves the dominant HBM stream (x) and uses the MXU's
    # native bf16 path; accumulation and the epilogue stay in f32.  When this
    # MLP sits inside a larger jit, XLA fuses the cast into the producer of x.
    xc = x.astype(compute_dtype)
    w1c = w1.astype(compute_dtype)
    w2c = w2.astype(compute_dtype)
    b1_2d = b1.reshape(1, H).astype(jnp.float32)
    b2_2d = b2.reshape(1, C).astype(jnp.float32)

    if b_padded != B:
        xc = jnp.pad(xc, ((0, b_padded - B), (0, 0)))

    kernel = _make_bert_mlp_kernel(use_softmax)

    in_bytes = jnp.dtype(compute_dtype).itemsize
    cost = pl.CostEstimate(
        flops=2 * b_padded * D * H + 2 * b_padded * H * C,
        transcendentals=b_padded * C + b_padded,
        bytes_accessed=(b_padded * D + D * H + H * C) * in_bytes
        + (H + C) * 4
        + b_padded * C * jnp.dtype(out_dtype).itemsize,
    )

    out = pl.pallas_call(
        kernel,
        out_shape=jax.ShapeDtypeStruct((b_padded, C), out_dtype),
        grid_spec=pl.GridSpec(
            grid=(n_steps,),
            in_specs=[
                pl.BlockSpec((block_m, D), lambda i: (i, 0)),   # x rows (streamed)
                pl.BlockSpec((D, H), lambda i: (0, 0)),          # W1 (VMEM-resident)
                pl.BlockSpec((1, H), lambda i: (0, 0)),          # b1
                pl.BlockSpec((H, C), lambda i: (0, 0)),          # W2 (VMEM-resident)
                pl.BlockSpec((1, C), lambda i: (0, 0)),          # b2
            ],
            out_specs=pl.BlockSpec((block_m, C), lambda i: (i, 0)),
        ),
        compiler_params=pltpu.CompilerParams(
            dimension_semantics=("parallel",),       # shards across TCs on v7x
            vmem_limit_bytes=32 * 1024 * 1024,       # ample even at block_m=1024 bf16
        ),
        cost_estimate=cost,
    )(xc, w1c, b1_2d, w2c, b2_2d)

    if b_padded != B:
        out = out[:B]
    return out


if __name__ == "__main__":
    key = jax.random.PRNGKey(0)
    kx, kw1, kb1, kw2, kb2 = jax.random.split(key, 5)

    in_size, hidden = 768, 128

    # torch nn.Linear stores (out, in); build the (in, out) transposed form.
    w1 = jax.random.normal(kw1, (in_size, hidden), dtype=jnp.float32) * 0.02
    b1 = jax.random.normal(kb1, (hidden,), dtype=jnp.float32) * 0.02

    def ref_forward(x, w2, b2, num_class):
        h = jnp.maximum(x @ w1 + b1, 0.0)
        logits = h @ w2 + b2
        if num_class > 2:
            return jax.nn.softmax(logits, axis=-1)
        return jax.nn.sigmoid(logits)

    # --- multi-class path (num_class > 2 -> softmax) ---
    num_class = 4
    w2 = jax.random.normal(kw2, (hidden, num_class), dtype=jnp.float32) * 0.02
    b2 = jax.random.normal(kb2, (num_class,), dtype=jnp.float32) * 0.02

    # batch=16: single-step grid; batch=37: exercises batch padding/slicing;
    # batch=1024: exercises the multi-step (>=2, megacore-shardable) grid.
    for batch in (16, 37, 1024):
        x = jax.random.normal(jax.random.fold_in(kx, batch),
                              (batch, in_size), dtype=jnp.float32)
        out = bert_mlp_forward(x, w1, b1, w2, b2, num_class=num_class)
        jax.block_until_ready(out)
        ref = ref_forward(x, w2, b2, num_class)
        assert out.shape == (batch, num_class), out.shape
        assert out.dtype == x.dtype, out.dtype
        assert bool(jnp.all(jnp.isfinite(out)))
        err = float(jnp.max(jnp.abs(out - ref)))
        assert err < 3e-2, err  # bf16 matmul inputs + approx reciprocal

    # --- binary path (num_class <= 2 -> Linear(128, 1) + sigmoid) ---
    w2b = jax.random.normal(kw2, (hidden, 1), dtype=jnp.float32) * 0.02
    b2b = jax.random.normal(kb2, (1,), dtype=jnp.float32) * 0.02
    xb = jax.random.normal(kx, (16, in_size), dtype=jnp.float32)

    out_bin = bert_mlp_forward(xb, w1, b1, w2b, b2b, num_class=2)
    jax.block_until_ready(out_bin)
    ref_bin = ref_forward(xb, w2b, b2b, 2)
    assert out_bin.shape == (16, 1), out_bin.shape
    err_bin = float(jnp.max(jnp.abs(out_bin - ref_bin)))
    assert err_bin < 3e-2, err_bin

    print("KERNEL_OK")
</pallas_src>

<mosaic_0001>
module attributes {stable_mosaic.version = 11 : i64} {
  func.func @kernel(%arg0: i32, %arg1: memref<16x768xbf16, #tpu.memory_space<vmem>>, %arg2: memref<768x128xbf16, #tpu.memory_space<vmem>>, %arg3: memref<1x128xf32, #tpu.memory_space<vmem>>, %arg4: memref<128x4xbf16, #tpu.memory_space<vmem>>, %arg5: memref<1x4xf32, #tpu.memory_space<vmem>>, %arg6: memref<16x4xf32, #tpu.memory_space<vmem>>) attributes {dimension_semantics = [#tpu.dimension_semantics<parallel>], iteration_bounds = array<i64: 1>, scalar_prefetch = 0 : i64, scratch_operands = 0 : i64, tpu.core_type = #tpu.core_type<tc>, window_params = [{transform_indices = @transform_0, window_bounds = array<i64: 16, 768>}, {pipeline_mode = #tpu.pipeline_mode<synchronous>, transform_indices = @transform_1, window_bounds = array<i64: 768, 128>}, {pipeline_mode = #tpu.pipeline_mode<synchronous>, transform_indices = @transform_2, window_bounds = array<i64: 1, 128>}, {pipeline_mode = #tpu.pipeline_mode<synchronous>, transform_indices = @transform_3, window_bounds = array<i64: 128, 4>}, {pipeline_mode = #tpu.pipeline_mode<synchronous>, transform_indices = @transform_4, window_bounds = array<i64: 1, 4>}, {transform_indices = @transform_5, window_bounds = array<i64: 16, 4>}]} {
    %c0 = arith.constant 0 : index
    %c0_0 = arith.constant 0 : index
    %0 = vector.load %arg1[%c0, %c0_0] : memref<16x768xbf16, #tpu.memory_space<vmem>>, vector<16x768xbf16>
    %c0_1 = arith.constant 0 : index
    %c0_2 = arith.constant 0 : index
    %1 = vector.load %arg2[%c0_1, %c0_2] : memref<768x128xbf16, #tpu.memory_space<vmem>>, vector<768x128xbf16>
    %cst = arith.constant dense<0.000000e+00> : vector<16x128xf32>
    %2 = tpu.matmul %0, %1, %cst {dimension_numbers = #tpu.dot_dimension_numbers<[1], [0], [0], [1], [0, 0, 1, 1], [], []>} : vector<16x768xbf16>, vector<768x128xbf16>, vector<16x128xf32> -> vector<16x128xf32>
    %c0_3 = arith.constant 0 : index
    %c0_4 = arith.constant 0 : index
    %3 = vector.load %arg3[%c0_3, %c0_4] : memref<1x128xf32, #tpu.memory_space<vmem>>, vector<1x128xf32>
    %4 = vector.broadcast %3 : vector<1x128xf32> to vector<16x128xf32>
    %5 = arith.addf %2, %4 : vector<16x128xf32>
    %cst_5 = arith.constant 0.000000e+00 : f32
    %6 = vector.broadcast %cst_5 : f32 to vector<16x128xf32>
    %7 = arith.maximumf %5, %6 : vector<16x128xf32>
    %8 = arith.truncf %7 : vector<16x128xf32> to vector<16x128xbf16>
    %c0_6 = arith.constant 0 : index
    %c0_7 = arith.constant 0 : index
    %9 = vector.load %arg4[%c0_6, %c0_7] : memref<128x4xbf16, #tpu.memory_space<vmem>>, vector<128x4xbf16>
    %cst_8 = arith.constant dense<0.000000e+00> : vector<16x4xf32>
    %10 = tpu.matmul %8, %9, %cst_8 {dimension_numbers = #tpu.dot_dimension_numbers<[1], [0], [0], [1], [0, 0, 1, 1], [], []>} : vector<16x128xbf16>, vector<128x4xbf16>, vector<16x4xf32> -> vector<16x4xf32>
    %c0_9 = arith.constant 0 : index
    %c0_10 = arith.constant 0 : index
    %11 = vector.load %arg5[%c0_9, %c0_10] : memref<1x4xf32, #tpu.memory_space<vmem>>, vector<1x4xf32>
    %12 = vector.broadcast %11 : vector<1x4xf32> to vector<16x4xf32>
    %13 = arith.addf %10, %12 : vector<16x4xf32>
    %cst_11 = arith.constant dense<0xFF800000> : vector<16xf32>
    %14 = vector.multi_reduction <maximumf>, %13, %cst_11 [1] : vector<16x4xf32> to vector<16xf32>
    %15 = vector.shape_cast %14 : vector<16xf32> to vector<16x1xf32>
    %16 = vector.broadcast %15 : vector<16x1xf32> to vector<16x4xf32>
    %17 = arith.subf %13, %16 : vector<16x4xf32>
    %18 = math.exp %17 : vector<16x4xf32>
    %cst_12 = arith.constant dense<0.000000e+00> : vector<16xf32>
    %19 = vector.multi_reduction <add>, %18, %cst_12 [1] : vector<16x4xf32> to vector<16xf32>
    %20 = vector.shape_cast %19 : vector<16xf32> to vector<16x1xf32>
    %21 = tpu.reciprocal %20 {approx = true} : vector<16x1xf32> -> vector<16x1xf32>
    %22 = vector.broadcast %21 : vector<16x1xf32> to vector<16x4xf32>
    %23 = arith.mulf %18, %22 : vector<16x4xf32>
    %c0_13 = arith.constant 0 : index
    %c0_14 = arith.constant 0 : index
    %24 = vector.load %arg6[%c0_13, %c0_14] : memref<16x4xf32, #tpu.memory_space<vmem>>, vector<16x4xf32>
    tpu.vector_store %arg6[%c0_13, %c0_14], %23 {strides = array<i32>} : memref<16x4xf32, #tpu.memory_space<vmem>>, vector<16x4xf32>,
    return
  }
  func.func @transform_0(%arg0: i32) -> (i32, i32) {
    %c0_i32 = arith.constant 0 : i32
    %c0_i32_0 = arith.constant 0 : i32
    return %arg0, %c0_i32 : i32, i32
  }
  func.func @transform_1(%arg0: i32) -> (i32, i32) {
    %c0_i32 = arith.constant 0 : i32
    %c0_i32_0 = arith.constant 0 : i32
    %c0_i32_1 = arith.constant 0 : i32
    return %c0_i32, %c0_i32_0 : i32, i32
  }
  func.func @transform_2(%arg0: i32) -> (i32, i32) {
    %c0_i32 = arith.constant 0 : i32
    %c0_i32_0 = arith.constant 0 : i32
    %c0_i32_1 = arith.constant 0 : i32
    return %c0_i32, %c0_i32_0 : i32, i32
  }
  func.func @transform_3(%arg0: i32) -> (i32, i32) {
    %c0_i32 = arith.constant 0 : i32
    %c0_i32_0 = arith.constant 0 : i32
    %c0_i32_1 = arith.constant 0 : i32
    return %c0_i32, %c0_i32_0 : i32, i32
  }
  func.func @transform_4(%arg0: i32) -> (i32, i32) {
    %c0_i32 = arith.constant 0 : i32
    %c0_i32_0 = arith.constant 0 : i32
    %c0_i32_1 = arith.constant 0 : i32
    return %c0_i32, %c0_i32_0 : i32, i32
  }
  func.func @transform_5(%arg0: i32) -> (i32, i32) {
    %c0_i32 = arith.constant 0 : i32
    %c0_i32_0 = arith.constant 0 : i32
    return %arg0, %c0_i32 : i32, i32
  }
}

</mosaic_0001>

<llo_original>
// kernel: bert_mlp_forward.1
$region0: #{bert_mlp_forward.1}
  #allocation0 [shape = 'u32[]', space=smem, size = 0x4, offset = 0x4, fixed_abs, tag = 'smem constant byte address 0x4 - core index']
  #allocation1 [shape = 'u32[144,128]{1,0:T(1,128)}', space=vmem, size = 0x12000, scoped, tag = 'internal scratch']
  %s0 = inlined_call_operand.vmem [shape: bf16[16,768], index: 0, kind: input, shape index: {}]
  %s1 = inlined_call_operand.vmem [shape: bf16[768,128], index: 1, kind: input, shape index: {}]
  %s2 = inlined_call_operand.vmem [shape: f32[1,128], index: 2, kind: input, shape index: {}]
  %s3 = inlined_call_operand.vmem [shape: bf16[128,4], index: 3, kind: input, shape index: {}]
  %s4 = inlined_call_operand.vmem [shape: f32[1,4], index: 4, kind: input, shape index: {}]
  %s5 = inlined_call_operand.vmem [shape: f32[16,4], index: 5, kind: output, shape index: {}]
  %s6 = sld [smem:[#allocation0]]
  $region30: #{bert_mlp_forward.1} parent=0
    _
  %s8 = ssub.s32 1, %s6
  %s9 = scalar_select 0, %s8, %s6
  // Predicated region
  $region2: #{bert_mlp_forward.1} parent=0 // pred_check
    _
  $region3: #{bert_mlp_forward.1} parent=0 // pred_check_branch
    %11 = sbr.rel (0) target = $region5
  $region4: #{bert_mlp_forward.1} parent=0 // pred_region
    _
  $region5: #{bert_mlp_forward.1} parent=0 // pred_fallthru
    _
  // Predicated region
  $region6: #{bert_mlp_forward.1} parent=0 // pred_check
    _
  $region7: #{bert_mlp_forward.1} parent=0 // pred_check_branch
    %13 = sbr.rel (0) target = $region9
  $region8: #{bert_mlp_forward.1} parent=0 // pred_region
    _
  $region9: #{bert_mlp_forward.1} parent=0 // pred_fallthru
    _
  // Predicated region
  $region10: #{bert_mlp_forward.1} parent=0 // pred_check
    _
  $region11: #{bert_mlp_forward.1} parent=0 // pred_check_branch
    %15 = sbr.rel (0) target = $region13
  $region12: #{bert_mlp_forward.1} parent=0 // pred_region
    _
  $region13: #{bert_mlp_forward.1} parent=0 // pred_fallthru
    _
  // Predicated region
  $region14: #{bert_mlp_forward.1} parent=0 // pred_check
    _
  $region15: #{bert_mlp_forward.1} parent=0 // pred_check_branch
    %17 = sbr.rel (0) target = $region17
  $region16: #{bert_mlp_forward.1} parent=0 // pred_region
    _
  $region17: #{bert_mlp_forward.1} parent=0 // pred_fallthru
    _
  // Predicated region
  $region18: #{bert_mlp_forward.1} parent=0 // pred_check
    _
  $region19: #{bert_mlp_forward.1} parent=0 // pred_check_branch
    %19 = sbr.rel (0) target = $region21
  $region20: #{bert_mlp_forward.1} parent=0 // pred_region
    _
  $region21: #{bert_mlp_forward.1} parent=0 // pred_fallthru
    _
  %v21 = vld [vmem:[%s0] sm:$0xff]
  %v22 = vld [vmem:[%s0 + $0x8] sm:$0xff]
  %v23 = vld [vmem:[%s0 + $0x10] sm:$0xff]
  %v24 = vld [vmem:[%s0 + $0x18] sm:$0xff]
  %v25 = vld [vmem:[%s0 + $0x20] sm:$0xff]
  %v26 = vld [vmem:[%s0 + $0x28] sm:$0xff]
  %v27 = vld [vmem:[%s1] sm:$0xf]
  %v28 = vld [vmem:[%s1 + $0x4] sm:$0xf]
  %v29 = vld [vmem:[%s1 + $0x8] sm:$0xf]
  %v30 = vld [vmem:[%s1 + $0xc] sm:$0xf]
  %v31 = vld [vmem:[%s1 + $0x10] sm:$0xf]
  %v32 = vld [vmem:[%s1 + $0x14] sm:$0xf]
  %v33 = vld [vmem:[%s1 + $0x18] sm:$0xf]
  %v34 = vld [vmem:[%s1 + $0x1c] sm:$0xf]
  %v35 = vld [vmem:[%s1 + $0x20] sm:$0xf]
  %v36 = vld [vmem:[%s1 + $0x24] sm:$0xf]
  %v37 = vld [vmem:[%s1 + $0x28] sm:$0xf]
  %v38 = vld [vmem:[%s1 + $0x2c] sm:$0xf]
  %v39 = vld [vmem:[%s1 + $0x30] sm:$0xf]
  %v40 = vld [vmem:[%s1 + $0x34] sm:$0xf]
  %v41 = vld [vmem:[%s1 + $0x38] sm:$0xf]
  %v42 = vld [vmem:[%s1 + $0x3c] sm:$0xf]
  %v43 = vld [vmem:[%s1 + $0x40] sm:$0xf]
  %v44 = vld [vmem:[%s1 + $0x44] sm:$0xf]
  %v45 = vld [vmem:[%s1 + $0x48] sm:$0xf]
  %v46 = vld [vmem:[%s1 + $0x4c] sm:$0xf]
  %v47 = vld [vmem:[%s1 + $0x50] sm:$0xf]
  %v48 = vld [vmem:[%s1 + $0x54] sm:$0xf]
  %v49 = vld [vmem:[%s1 + $0x58] sm:$0xf]
  %v50 = vld [vmem:[%s1 + $0x5c] sm:$0xf]
  %v51 = vld [vmem:[%s1 + $0x60] sm:$0xf]
  %v52 = vld [vmem:[%s1 + $0x64] sm:$0xf]
  %v53 = vld [vmem:[%s1 + $0x68] sm:$0xf]
  %v54 = vld [vmem:[%s1 + $0x6c] sm:$0xf]
  %v55 = vld [vmem:[%s1 + $0x70] sm:$0xf]
  %v56 = vld [vmem:[%s1 + $0x74] sm:$0xf]
  %v57 = vld [vmem:[%s1 + $0x78] sm:$0xf]
  %v58 = vld [vmem:[%s1 + $0x7c] sm:$0xf]
  %v59 = vld [vmem:[%s1 + $0x80] sm:$0xf]
  %v60 = vld [vmem:[%s1 + $0x84] sm:$0xf]
  %v61 = vld [vmem:[%s1 + $0x88] sm:$0xf]
  %v62 = vld [vmem:[%s1 + $0x8c] sm:$0xf]
  %v63 = vld [vmem:[%s1 + $0x90] sm:$0xf]
  %v64 = vld [vmem:[%s1 + $0x94] sm:$0xf]
  %v65 = vld [vmem:[%s1 + $0x98] sm:$0xf]
  %v66 = vld [vmem:[%s1 + $0x9c] sm:$0xf]
  %v67 = vld [vmem:[%s1 + $0xa0] sm:$0xf]
  %v68 = vld [vmem:[%s1 + $0xa4] sm:$0xf]
  %v69 = vld [vmem:[%s1 + $0xa8] sm:$0xf]
  %v70 = vld [vmem:[%s1 + $0xac] sm:$0xf]
  %v71 = vld [vmem:[%s1 + $0xb0] sm:$0xf]
  %v72 = vld [vmem:[%s1 + $0xb4] sm:$0xf]
  %v73 = vld [vmem:[%s1 + $0xb8] sm:$0xf]
  %v74 = vld [vmem:[%s1 + $0xbc] sm:$0xf]
  %v75 = vld [vmem:[%s1 + $0xc0] sm:$0xf]
  %v76 = vld [vmem:[%s1 + $0xc4] sm:$0xf]
  %v77 = vld [vmem:[%s1 + $0xc8] sm:$0xf]
  %v78 = vld [vmem:[%s1 + $0xcc] sm:$0xf]
  %v79 = vld [vmem:[%s1 + $0xd0] sm:$0xf]
  %v80 = vld [vmem:[%s1 + $0xd4] sm:$0xf]
  %v81 = vld [vmem:[%s1 + $0xd8] sm:$0xf]
  %v82 = vld [vmem:[%s1 + $0xdc] sm:$0xf]
  %v83 = vld [vmem:[%s1 + $0xe0] sm:$0xf]
  %v84 = vld [vmem:[%s1 + $0xe4] sm:$0xf]
  %v85 = vld [vmem:[%s1 + $0xe8] sm:$0xf]
  %v86 = vld [vmem:[%s1 + $0xec] sm:$0xf]
  %v87 = vld [vmem:[%s1 + $0xf0] sm:$0xf]
  %v88 = vld [vmem:[%s1 + $0xf4] sm:$0xf]
  %v89 = vld [vmem:[%s1 + $0xf8] sm:$0xf]
  %v90 = vld [vmem:[%s1 + $0xfc] sm:$0xf]
  %v91 = vld [vmem:[%s1 + $0x100] sm:$0xf]
  %v92 = vld [vmem:[%s1 + $0x104] sm:$0xf]
  %v93 = vld [vmem:[%s1 + $0x108] sm:$0xf]
  %v94 = vld [vmem:[%s1 + $0x10c] sm:$0xf]
  %v95 = vld [vmem:[%s1 + $0x110] sm:$0xf]
  %v96 = vld [vmem:[%s1 + $0x114] sm:$0xf]
  %v97 = vld [vmem:[%s1 + $0x118] sm:$0xf]
  %v98 = vld [vmem:[%s1 + $0x11c] sm:$0xf]
  %v99 = vld [vmem:[%s1 + $0x120] sm:$0xf]
  %v100 = vld [vmem:[%s1 + $0x124] sm:$0xf]
  %v101 = vld [vmem:[%s1 + $0x128] sm:$0xf]
  %v102 = vld [vmem:[%s1 + $0x12c] sm:$0xf]
  %v103 = vld [vmem:[%s1 + $0x130] sm:$0xf]
  %v104 = vld [vmem:[%s1 + $0x134] sm:$0xf]
  %v105 = vld [vmem:[%s1 + $0x138] sm:$0xf]
  %v106 = vld [vmem:[%s1 + $0x13c] sm:$0xf]
  %v107 = vld [vmem:[%s1 + $0x140] sm:$0xf]
  %v108 = vld [vmem:[%s1 + $0x144] sm:$0xf]
  %v109 = vld [vmem:[%s1 + $0x148] sm:$0xf]
  %v110 = vld [vmem:[%s1 + $0x14c] sm:$0xf]
  %v111 = vld [vmem:[%s1 + $0x150] sm:$0xf]
  %v112 = vld [vmem:[%s1 + $0x154] sm:$0xf]
  %v113 = vld [vmem:[%s1 + $0x158] sm:$0xf]
  %v114 = vld [vmem:[%s1 + $0x15c] sm:$0xf]
  %v115 = vld [vmem:[%s1 + $0x160] sm:$0xf]
  %v116 = vld [vmem:[%s1 + $0x164] sm:$0xf]
  %v117 = vld [vmem:[%s1 + $0x168] sm:$0xf]
  %v118 = vld [vmem:[%s1 + $0x16c] sm:$0xf]
  %v119 = vld [vmem:[%s1 + $0x170] sm:$0xf]
  %v120 = vld [vmem:[%s1 + $0x174] sm:$0xf]
  %v121 = vld [vmem:[%s1 + $0x178] sm:$0xf]
  %v122 = vld [vmem:[%s1 + $0x17c] sm:$0xf]
  %v123 = vld [vmem:[%s2] sm:$0x1]
  %v125 = vlaneseq
  %v126 = vshrl.u32 %v125, 7
  %v127 = vsub.s32 0, %v126
  %v128 = vrot.slane %v123, %v127
  %v136 = vunpack.c.l.b16 %v21
  %v137 = vunpack.c.h.b16 %v21
  %v138 = vunpack.c.l.b16 %v22
  %v139 = vunpack.c.h.b16 %v22
  %v140 = vunpack.c.l.b16 %v23
  %v141 = vunpack.c.h.b16 %v23
  %v142 = vunpack.c.l.b16 %v24
  %v143 = vunpack.c.h.b16 %v24
  %v144 = vunpack.c.l.b16 %v25
  %v145 = vunpack.c.h.b16 %v25
  %v146 = vunpack.c.l.b16 %v26
  %v147 = vunpack.c.h.b16 %v26
  %v148 = vpack.c.b16 %v142, %v136
  %v149 = vpack.c.b16 %v143, %v137
  %v150 = vpack.c.b16 %v144, %v138
  %v151 = vpack.c.b16 %v145, %v139
  %v152 = vpack.c.b16 %v146, %v140
  %v153 = vpack.c.b16 %v147, %v141
  %v256 = vunpack.c.l.b16 %v27
  %v257 = vunpack.c.l.b16 %v28
  %v258 = vunpack.c.l.b16 %v29
  %v259 = vunpack.c.l.b16 %v30
  %v260 = vunpack.c.l.b16 %v31
  %v261 = vunpack.c.l.b16 %v32
  %v262 = vunpack.c.l.b16 %v33
  %v263 = vunpack.c.l.b16 %v34
  %v264 = vunpack.c.l.b16 %v35
  %v265 = vunpack.c.l.b16 %v36
  %v266 = vunpack.c.l.b16 %v37
  %v267 = vunpack.c.l.b16 %v38
  %v268 = vunpack.c.l.b16 %v39
  %v269 = vunpack.c.l.b16 %v40
  %v270 = vunpack.c.l.b16 %v41
  %v271 = vunpack.c.l.b16 %v42
  %v272 = vunpack.c.l.b16 %v43
  %v273 = vunpack.c.l.b16 %v44
  %v274 = vunpack.c.l.b16 %v45
  %v275 = vunpack.c.l.b16 %v46
  %v276 = vunpack.c.l.b16 %v47
  %v277 = vunpack.c.l.b16 %v48
  %v278 = vunpack.c.l.b16 %v49
  %v279 = vunpack.c.l.b16 %v50
  %v280 = vunpack.c.l.b16 %v51
  %v281 = vunpack.c.l.b16 %v52
  %v282 = vunpack.c.l.b16 %v53
  %v283 = vunpack.c.l.b16 %v54
  %v284 = vunpack.c.l.b16 %v55
  %v285 = vunpack.c.l.b16 %v56
  %v286 = vunpack.c.l.b16 %v57
  %v287 = vunpack.c.l.b16 %v58
  %v288 = vunpack.c.l.b16 %v59
  %v289 = vunpack.c.l.b16 %v60
  %v290 = vunpack.c.l.b16 %v61
  %v291 = vunpack.c.l.b16 %v62
  %v292 = vunpack.c.l.b16 %v63
  %v293 = vunpack.c.l.b16 %v64
  %v294 = vunpack.c.l.b16 %v65
  %v295 = vunpack.c.l.b16 %v66
  %v296 = vunpack.c.l.b16 %v67
  %v297 = vunpack.c.l.b16 %v68
  %v298 = vunpack.c.l.b16 %v69
  %v299 = vunpack.c.l.b16 %v70
  %v300 = vunpack.c.l.b16 %v71
  %v301 = vunpack.c.l.b16 %v72
  %v302 = vunpack.c.l.b16 %v73
  %v303 = vunpack.c.l.b16 %v74
  %v304 = vunpack.c.l.b16 %v75
  %v305 = vunpack.c.l.b16 %v76
  %v306 = vunpack.c.l.b16 %v77
  %v307 = vunpack.c.l.b16 %v78
  %v308 = vunpack.c.l.b16 %v79
  %v309 = vunpack.c.l.b16 %v80
  %v310 = vunpack.c.l.b16 %v81
  %v311 = vunpack.c.l.b16 %v82
  %v312 = vunpack.c.l.b16 %v83
  %v313 = vunpack.c.l.b16 %v84
  %v314 = vunpack.c.l.b16 %v85
  %v315 = vunpack.c.l.b16 %v86
  %v316 = vunpack.c.l.b16 %v87
  %v317 = vunpack.c.l.b16 %v88
  %v318 = vunpack.c.l.b16 %v89
  %v319 = vunpack.c.l.b16 %v90
  %v320 = vunpack.c.l.b16 %v91
  %v321 = vunpack.c.l.b16 %v92
  %v322 = vunpack.c.l.b16 %v93
  %v323 = vunpack.c.l.b16 %v94
  %v324 = vunpack.c.l.b16 %v95
  %v325 = vunpack.c.l.b16 %v96
  %v326 = vunpack.c.l.b16 %v97
  %v327 = vunpack.c.l.b16 %v98
  %v328 = vunpack.c.l.b16 %v99
  %v329 = vunpack.c.l.b16 %v100
  %v330 = vunpack.c.l.b16 %v101
  %v331 = vunpack.c.l.b16 %v102
  %v332 = vunpack.c.l.b16 %v103
  %v333 = vunpack.c.l.b16 %v104
  %v334 = vunpack.c.l.b16 %v105
  %v335 = vunpack.c.l.b16 %v106
  %v336 = vunpack.c.l.b16 %v107
  %v337 = vunpack.c.l.b16 %v108
  %v338 = vunpack.c.l.b16 %v109
  %v339 = vunpack.c.l.b16 %v110
  %v340 = vunpack.c.l.b16 %v111
  %v341 = vunpack.c.l.b16 %v112
  %v342 = vunpack.c.l.b16 %v113
  %v343 = vunpack.c.l.b16 %v114
  %v344 = vunpack.c.l.b16 %v115
  %v345 = vunpack.c.l.b16 %v116
  %v346 = vunpack.c.l.b16 %v117
  %v347 = vunpack.c.l.b16 %v118
  %v348 = vunpack.c.l.b16 %v119
  %v349 = vunpack.c.l.b16 %v120
  %v350 = vunpack.c.l.b16 %v121
  %v351 = vunpack.c.l.b16 %v122
  %v352 = vpack.c.b16 %v257, %v256
  %v353 = vpack.c.b16 %v259, %v258
  %v354 = vpack.c.b16 %v261, %v260
  %v355 = vpack.c.b16 %v263, %v262
  %v356 = vpack.c.b16 %v265, %v264
  %v357 = vpack.c.b16 %v267, %v266
  %v358 = vpack.c.b16 %v269, %v268
  %v359 = vpack.c.b16 %v271, %v270
  %v360 = vpack.c.b16 %v273, %v272
  %v361 = vpack.c.b16 %v275, %v274
  %v362 = vpack.c.b16 %v277, %v276
  %v363 = vpack.c.b16 %v279, %v278
  %v364 = vpack.c.b16 %v281, %v280
  %v365 = vpack.c.b16 %v283, %v282
  %v366 = vpack.c.b16 %v285, %v284
  %v367 = vpack.c.b16 %v287, %v286
  %v368 = vpack.c.b16 %v289, %v288
  %v369 = vpack.c.b16 %v291, %v290
  %v370 = vpack.c.b16 %v293, %v292
  %v371 = vpack.c.b16 %v295, %v294
  %v372 = vpack.c.b16 %v297, %v296
  %v373 = vpack.c.b16 %v299, %v298
  %v374 = vpack.c.b16 %v301, %v300
  %v375 = vpack.c.b16 %v303, %v302
  %v376 = vpack.c.b16 %v305, %v304
  %v377 = vpack.c.b16 %v307, %v306
  %v378 = vpack.c.b16 %v309, %v308
  %v379 = vpack.c.b16 %v311, %v310
  %v380 = vpack.c.b16 %v313, %v312
  %v381 = vpack.c.b16 %v315, %v314
  %v382 = vpack.c.b16 %v317, %v316
  %v383 = vpack.c.b16 %v319, %v318
  %v384 = vpack.c.b16 %v321, %v320
  %v385 = vpack.c.b16 %v323, %v322
  %v386 = vpack.c.b16 %v325, %v324
  %v387 = vpack.c.b16 %v327, %v326
  %v388 = vpack.c.b16 %v329, %v328
  %v389 = vpack.c.b16 %v331, %v330
  %v390 = vpack.c.b16 %v333, %v332
  %v391 = vpack.c.b16 %v335, %v334
  %v392 = vpack.c.b16 %v337, %v336
  %v393 = vpack.c.b16 %v339, %v338
  %v394 = vpack.c.b16 %v341, %v340
  %v395 = vpack.c.b16 %v343, %v342
  %v396 = vpack.c.b16 %v345, %v344
  %v397 = vpack.c.b16 %v347, %v346
  %v398 = vpack.c.b16 %v349, %v348
  %v399 = vpack.c.b16 %v351, %v350
  %448 = vmatprep.subr.bf16.mxu0 0
  %449 = vmatpush1.bf16.msra.mxu0 %v352
  %450 = vmatprep.subr.bf16.mxu0 0
  %451 = vmatpush1.bf16.msra.mxu0 %v353
  %452 = vmatprep.subr.bf16.mxu0 0
  %453 = vmatpush1.bf16.msra.mxu0 %v354
  %454 = vmatprep.subr.bf16.mxu0 0
  %455 = vmatpush1.bf16.msra.mxu0 %v355
  %456 = vmatprep.subr.bf16.mxu0 0
  %457 = vmatpush1.bf16.msra.mxu0 %v356
  %458 = vmatprep.subr.bf16.mxu0 0
  %459 = vmatpush1.bf16.msra.mxu0 %v357
  %460 = vmatprep.subr.bf16.mxu0 0
  %461 = vmatpush1.bf16.msra.mxu0 %v358
  %462 = vmatprep.subr.bf16.mxu0 0
  %463 = vmatpush1.bf16.msra.mxu0 %v359
  %464 = vmatprep.subr.bf16.mxu0 0
  %465 = vmatpush1.bf16.msra.mxu0 %v360
  %466 = vmatprep.subr.bf16.mxu0 0
  %467 = vmatpush1.bf16.msra.mxu0 %v361
  %468 = vmatprep.subr.bf16.mxu0 0
  %469 = vmatpush1.bf16.msra.mxu0 %v362
  %470 = vmatprep.subr.bf16.mxu0 0
  %471 = vmatpush1.bf16.msra.mxu0 %v363
  %472 = vmatprep.subr.bf16.mxu0 0
  %473 = vmatpush1.bf16.msra.mxu0 %v364
  %474 = vmatprep.subr.bf16.mxu0 0
  %475 = vmatpush1.bf16.msra.mxu0 %v365
  %476 = vmatprep.subr.bf16.mxu0 0
  %477 = vmatpush1.bf16.msra.mxu0 %v366
  %478 = vmatprep.subr.bf16.mxu0 0
  %479 = vmatpush1.bf16.msra.mxu0 %v367
  %480 = vmatprep.mubr.bf16.mxu0 %v149
  %481 = vmatmul.mubr.bf16.gmra.mrb[0].mxu0 %v148
  %v482 = vpop.f32.mrb[0].mxu0
  %v483 = vadd.f32 %v128, %v482
  %v484 = vpop.f32.mrb[0].mxu0
  %v485 = vpop.f32.mrb[0].mxu0
  %v486 = vadd.f32 %v128, %v485
  %v487 = vpop.f32.mrb[0].mxu0
  %488 = vdwg.mxu0
  %489 = vmatprep.subr.bf16.mxu0 0
  %490 = vmatpush1.bf16.msra.mxu0 %v368
  %491 = vmatprep.subr.bf16.mxu0 0
  %492 = vmatpush1.bf16.msra.mxu0 %v369
  %493 = vmatprep.subr.bf16.mxu0 0
  %494 = vmatpush1.bf16.msra.mxu0 %v370
  %495 = vmatprep.subr.bf16.mxu0 0
  %496 = vmatpush1.bf16.msra.mxu0 %v371
  %497 = vmatprep.subr.bf16.mxu0 0
  %498 = vmatpush1.bf16.msra.mxu0 %v372
  %499 = vmatprep.subr.bf16.mxu0 0
  %500 = vmatpush1.bf16.msra.mxu0 %v373
  %501 = vmatprep.subr.bf16.mxu0 0
  %502 = vmatpush1.bf16.msra.mxu0 %v374
  %503 = vmatprep.subr.bf16.mxu0 0
  %504 = vmatpush1.bf16.msra.mxu0 %v375
  %505 = vmatprep.subr.bf16.mxu0 0
  %506 = vmatpush1.bf16.msra.mxu0 %v376
  %507 = vmatprep.subr.bf16.mxu0 0
  %508 = vmatpush1.bf16.msra.mxu0 %v377
  %509 = vmatprep.subr.bf16.mxu0 0
  %510 = vmatpush1.bf16.msra.mxu0 %v378
  %511 = vmatprep.subr.bf16.mxu0 0
  %512 = vmatpush1.bf16.msra.mxu0 %v379
  %513 = vmatprep.subr.bf16.mxu0 0
  %514 = vmatpush1.bf16.msra.mxu0 %v380
  %515 = vmatprep.subr.bf16.mxu0 0
  %516 = vmatpush1.bf16.msra.mxu0 %v381
  %517 = vmatprep.subr.bf16.mxu0 0
  %518 = vmatpush1.bf16.msra.mxu0 %v382
  %519 = vmatprep.subr.bf16.mxu0 0
  %520 = vmatpush1.bf16.msra.mxu0 %v383
  %521 = vmatprep.mubr.bf16.mxu0 %v151
  %522 = vmatmul.mubr.bf16.gmra.mrb[0].mxu0 %v150
  %v523 = vpop.f32.mrb[0].mxu0
  %v524 = vadd.f32 %v483, %v523
  %v525 = vpop.f32.mrb[0].mxu0
  %v526 = vpop.f32.mrb[0].mxu0
  %v527 = vadd.f32 %v486, %v526
  %v528 = vpop.f32.mrb[0].mxu0
  %529 = vdwg.mxu0
  %530 = vmatprep.subr.bf16.mxu0 0
  %531 = vmatpush1.bf16.msra.mxu0 %v384
  %532 = vmatprep.subr.bf16.mxu0 0
  %533 = vmatpush1.bf16.msra.mxu0 %v385
  %534 = vmatprep.subr.bf16.mxu0 0
  %535 = vmatpush1.bf16.msra.mxu0 %v386
  %536 = vmatprep.subr.bf16.mxu0 0
  %537 = vmatpush1.bf16.msra.mxu0 %v387
  %538 = vmatprep.subr.bf16.mxu0 0
  %539 = vmatpush1.bf16.msra.mxu0 %v388
  %540 = vmatprep.subr.bf16.mxu0 0
  %541 = vmatpush1.bf16.msra.mxu0 %v389
  %542 = vmatprep.subr.bf16.mxu0 0
  %543 = vmatpush1.bf16.msra.mxu0 %v390
  %544 = vmatprep.subr.bf16.mxu0 0
  %545 = vmatpush1.bf16.msra.mxu0 %v391
  %546 = vmatprep.subr.bf16.mxu0 0
  %547 = vmatpush1.bf16.msra.mxu0 %v392
  %548 = vmatprep.subr.bf16.mxu0 0
  %549 = vmatpush1.bf16.msra.mxu0 %v393
  %550 = vmatprep.subr.bf16.mxu0 0
  %551 = vmatpush1.bf16.msra.mxu0 %v394
  %552 = vmatprep.subr.bf16.mxu0 0
  %553 = vmatpush1.bf16.msra.mxu0 %v395
  %554 = vmatprep.subr.bf16.mxu0 0
  %555 = vmatpush1.bf16.msra.mxu0 %v396
  %556 = vmatprep.subr.bf16.mxu0 0
  %557 = vmatpush1.bf16.msra.mxu0 %v397
  %558 = vmatprep.subr.bf16.mxu0 0
  %559 = vmatpush1.bf16.msra.mxu0 %v398
  %560 = vmatprep.subr.bf16.mxu0 0
  %561 = vmatpush1.bf16.msra.mxu0 %v399
  %562 = vmatprep.mubr.bf16.mxu0 %v153
  %563 = vmatmul.mubr.bf16.gmra.mrb[0].mxu0 %v152
  %v564 = vpop.f32.mrb[0].mxu0
  %v565 = vadd.f32 %v524, %v564
  %v566 = vpop.f32.mrb[0].mxu0
  %v567 = vpop.f32.mrb[0].mxu0
  %v568 = vadd.f32 %v527, %v567
  %v569 = vpop.f32.mrb[0].mxu0
  %570 = vdwg.mxu0
  %v571 = vmax.f32 %v565, 0.0
  %v572 = vmax.f32 %v568, 0.0
  %v573 = vpack.c.bf16 %v572, %v571
  %v574 = vld [vmem:[%s3] sm:$0xf]
  %v575 = vld [vmem:[%s3 + $0x4] sm:$0xf]
  %v576 = vld [vmem:[%s3 + $0x8] sm:$0xf]
  %v577 = vld [vmem:[%s3 + $0xc] sm:$0xf]
  %v578 = vld [vmem:[%s3 + $0x10] sm:$0xf]
  %v579 = vld [vmem:[%s3 + $0x14] sm:$0xf]
  %v580 = vld [vmem:[%s3 + $0x18] sm:$0xf]
  %v581 = vld [vmem:[%s3 + $0x1c] sm:$0xf]
  %v582 = vld [vmem:[%s3 + $0x20] sm:$0xf]
  %v583 = vld [vmem:[%s3 + $0x24] sm:$0xf]
  %v584 = vld [vmem:[%s3 + $0x28] sm:$0xf]
  %v585 = vld [vmem:[%s3 + $0x2c] sm:$0xf]
  %v586 = vld [vmem:[%s3 + $0x30] sm:$0xf]
  %v587 = vld [vmem:[%s3 + $0x34] sm:$0xf]
  %v588 = vld [vmem:[%s3 + $0x38] sm:$0xf]
  %v589 = vld [vmem:[%s3 + $0x3c] sm:$0xf]
  %v590 = vld [vmem:[%s4] sm:$0x1]
  %v592 = vlaneseq
  %v593 = vshrl.u32 %v592, 7
  %v594 = vsub.s32 0, %v593
  %v595 = vrot.slane %v590, %v594
  %v613 = vunpack.c.l.b16 %v574
  %v614 = vunpack.c.l.b16 %v575
  %v615 = vunpack.c.l.b16 %v576
  %v616 = vunpack.c.l.b16 %v577
  %v617 = vunpack.c.l.b16 %v578
  %v618 = vunpack.c.l.b16 %v579
  %v619 = vunpack.c.l.b16 %v580
  %v620 = vunpack.c.l.b16 %v581
  %v621 = vunpack.c.l.b16 %v582
  %v622 = vunpack.c.l.b16 %v583
  %v623 = vunpack.c.l.b16 %v584
  %v624 = vunpack.c.l.b16 %v585
  %v625 = vunpack.c.l.b16 %v586
  %v626 = vunpack.c.l.b16 %v587
  %v627 = vunpack.c.l.b16 %v588
  %v628 = vunpack.c.l.b16 %v589
  %v629 = vpack.c.b16 %v614, %v613
  %v630 = vpack.c.b16 %v616, %v615
  %v631 = vpack.c.b16 %v618, %v617
  %v632 = vpack.c.b16 %v620, %v619
  %v633 = vpack.c.b16 %v622, %v621
  %v634 = vpack.c.b16 %v624, %v623
  %v635 = vpack.c.b16 %v626, %v625
  %v636 = vpack.c.b16 %v628, %v627
  %645 = vmatprep.subr.bf16.mxu0 0
  %646 = vmatpush1.bf16.msra.mxu0 %v629
  %647 = vmatprep.subr.bf16.mxu0 0
  %648 = vmatpush1.bf16.msra.mxu0 %v630
  %649 = vmatprep.subr.bf16.mxu0 0
  %650 = vmatpush1.bf16.msra.mxu0 %v631
  %651 = vmatprep.subr.bf16.mxu0 0
  %652 = vmatpush1.bf16.msra.mxu0 %v632
  %653 = vmatprep.subr.bf16.mxu0 0
  %654 = vmatpush1.bf16.msra.mxu0 %v633
  %655 = vmatprep.subr.bf16.mxu0 0
  %656 = vmatpush1.bf16.msra.mxu0 %v634
  %657 = vmatprep.subr.bf16.mxu0 0
  %658 = vmatpush1.bf16.msra.mxu0 %v635
  %659 = vmatprep.subr.bf16.mxu0 0
  %660 = vmatpush1.bf16.msra.mxu0 %v636
  %661 = vmatprep.subr.bf16.mxu0 0
  %662 = vmatpush1.bf16.msra.mxu0 0
  %663 = vmatprep.subr.bf16.mxu0 0
  %664 = vmatpush1.bf16.msra.mxu0 0
  %665 = vmatprep.subr.bf16.mxu0 0
  %666 = vmatpush1.bf16.msra.mxu0 0
  %667 = vmatprep.subr.bf16.mxu0 0
  %668 = vmatpush1.bf16.msra.mxu0 0
  %669 = vmatprep.subr.bf16.mxu0 0
  %670 = vmatpush1.bf16.msra.mxu0 0
  %671 = vmatprep.subr.bf16.mxu0 0
  %672 = vmatpush1.bf16.msra.mxu0 0
  %673 = vmatprep.subr.bf16.mxu0 0
  %674 = vmatpush1.bf16.msra.mxu0 0
  %675 = vmatprep.subr.bf16.mxu0 0
  %676 = vmatpush1.bf16.msra.mxu0 0
  %677 = vmatprep.mubr.bf16.mxu0 0
  %678 = vmatmul.mubr.bf16.gmra.mrb[0].mxu0 %v573
  %v679 = vpop.f32.mrb[0].mxu0
  %v680 = vadd.f32 %v595, %v679
  %v681 = vpop.f32.mrb[0].mxu0
  %v682 = vpop.f32.mrb[0].mxu0
  %v683 = vadd.f32 %v595, %v682
  %v684 = vpop.f32.mrb[0].mxu0
  %685 = vdwg.mxu0
  %vm686 = vcmask 31744
  %v687 = vsel %vm686, %v680, -inf
  %688 = vmax.xlane.f32.xlu0 %v687
  %v689 = vpop.xlane.xlu0 %688
  %v690 = vsel %vm686, %v683, -inf
  %691 = vmax.xlane.f32.xlu0 %v690
  %v692 = vpop.xlane.xlu0 %691
  %v693 = vsub.f32 %v680, %v689
  %v694 = vsub.f32 %v683, %v692
  %v695 = vmul.f32 %v693, 1.442695
  %v696 = vpow.pop %v695
  %v697 = vmul.f32 %v694, 1.442695
  %v698 = vpow.pop %v697
  %v699 = vsel %vm686, %v696, 0.0
  %700 = vadd.xlane.f32.xlu0 %v699
  %v701 = vpop.xlane.xlu0 %700
  %v702 = vsel %vm686, %v698, 0.0
  %703 = vadd.xlane.f32.xlu0 %v702
  %v704 = vpop.xlane.xlu0 %703
  %v705 = vrcp.pop %v701
  %v706 = vrcp.pop %v704
  %v707 = vmul.f32 %v696, %v705
  %v708 = vmul.f32 %v698, %v706
  %709 = vst.msk [vmem:[%s5] sm:$0xff] %vm686, %v707
  %710 = vst.msk [vmem:[%s5 + $0x8] sm:$0xff] %vm686, %v708
  // Predicated region
  $region22: #{bert_mlp_forward.1} parent=0 // pred_check
    _
  $region23: #{bert_mlp_forward.1} parent=0 // pred_check_branch
    %712 = sbr.rel (0) target = $region25
  $region24: #{bert_mlp_forward.1} parent=0 // pred_region
    _
  $region25: #{bert_mlp_forward.1} parent=0 // pred_fallthru
    _
  // Predicated region
  $region26: #{bert_mlp_forward.1} parent=0 // pred_check
    _
  $region27: #{bert_mlp_forward.1} parent=0 // pred_check_branch
    %714 = sbr.rel (0) target = $region29
  $region28: #{bert_mlp_forward.1} parent=0 // pred_region
    _
  $region29: #{bert_mlp_forward.1} parent=0 // pred_fallthru
    _

</llo_original>
